<compile_context>
chip_gen: v5e
topology: v5e:2x2
jax: 0.10.0
libtpu: 0.0.40
codegen_flags: <defaults>
</compile_context>

<pallas_src>
import functools
import math

import jax
import jax.numpy as jnp
from jax import lax
from jax.experimental import pallas as pl
from jax.experimental.pallas import tpu as pltpu


def _tpu_generation():
    """Best-effort TPU generation (e.g. 5, 6, 7) from the default device."""
    try:
        kind = jax.devices()[0].device_kind.lower().replace(" ", "")
    except Exception:
        return None
    for g in (7, 6, 5, 4, 3, 2):
        if (f"v{g}" in kind) or kind.startswith(f"tpu{g}"):
            return g
    return None


def _round_up(x, m):
    return ((x + m - 1) // m) * m


def _pick_tiles(S):
    """Return (S_pad, tq, tk): pad awkward lengths, keep tq large, cap tk at 256."""
    if S <= 256:
        S_pad = _round_up(S, 8)
        return S_pad, S_pad, S_pad
    S_pad = _round_up(S, 128)
    tq = 128
    for t in (512, 384, 256, 128):
        if S_pad % t == 0:
            tq = t
            break
    tq = min(tq, S_pad)
    tk = 256 if S_pad % 256 == 0 else 128
    tk = min(tk, S_pad)
    return S_pad, tq, tk


def _pick_head_group(lead, D, per_head_bytes, *, budget_bytes, n_qtiles,
                     need_two_parallel):
    """Pick G (divides lead): fit VMEM budget, prefer lane-dense packing and
    (on 2-TC chips) at least 2 units of parallel grid work."""
    divisors = [g for g in range(1, lead + 1) if lead % g == 0]
    fitting = [g for g in divisors if g * per_head_bytes <= budget_bytes] or [1]

    def lane_ok(g):
        return D % 128 == 0 or (g * D) % 128 == 0

    def par_ok(g):
        return (not need_two_parallel) or lead == 1 or (lead // g) * n_qtiles >= 2

    for pred in (lambda g: lane_ok(g) and par_ok(g),
                 par_ok, lane_ok, (lambda g: True)):
        cands = [g for g in fitting if pred(g)]
        if cands:
            return max(cands)
    return 1


def _flash_attn_kernel(q_ref, k_ref, v_ref, o_ref, m_sc, l_sc, acc_sc, qs_sc, *,
                       scale, kv_len, block_k, exp_dtype, packed_out):
    kv = pl.program_id(2)

    @pl.when(kv == 0)
    def _init():
        m_sc[...] = jnp.full_like(m_sc, -jnp.inf)
        l_sc[...] = jnp.zeros_like(l_sc)
        acc_sc[...] = jnp.zeros_like(acc_sc)
        # Fold 1/sqrt(d_k) into Q once per (group, q-tile); the Q block is
        # resident across the whole KV reduction, so this is hoisted out of it.
        qs_sc[...] = q_ref[...] * jnp.asarray(scale, dtype=q_ref.dtype)

    q = qs_sc[...]                                       # (G, tq, D) native dtype
    k = k_ref[...]                                       # (G, tk, D)
    v = v_ref[...]                                       # (G, tk, D)

    # Scores: contract the last (D) dim of q and k directly -- no explicit k.T.
    s = lax.dot_general(
        q, k,
        dimension_numbers=(((2,), (2,)), ((0,), (0,))),
        preferred_element_type=jnp.float32,
    )                                                    # (G, tq, tk) f32

    if kv_len is not None:
        # Sequence was padded: mask padded KV columns out of the softmax.
        col = kv * block_k + lax.broadcasted_iota(jnp.int32, s.shape, 2)
        s = jnp.where(col < kv_len, s, -jnp.inf)

    # Online (streaming) softmax over the KV axis.
    m_prev = m_sc[...]
    m_new = jnp.maximum(m_prev, jnp.max(s, axis=-1, keepdims=True))
    alpha = jnp.exp(m_prev - m_new)                      # rescale factor (f32)
    # exp in bf16 on chips with a bf16 EUP when operands are bf16 (feeds the
    # MXU directly, no extra full-tile cast); f32 otherwise.
    p = jnp.exp((s - m_new).astype(exp_dtype))           # (G, tq, tk)

    l_sc[...] = alpha * l_sc[...] + jnp.sum(p, axis=-1, keepdims=True,
                                            dtype=jnp.float32)

    pv = lax.dot_general(
        p.astype(v.dtype), v,
        dimension_numbers=(((2,), (1,)), ((0,), (0,))),
        preferred_element_type=jnp.float32,
    )                                                    # (G, tq, D) f32
    acc_sc[...] = alpha * acc_sc[...] + pv
    m_sc[...] = m_new

    @pl.when(kv == pl.num_programs(2) - 1)
    def _finalize():
        inv = 1.0 / l_sc[...]                            # (G, tq, 1): exact divide is ~free
        if packed_out:
            # Lane-dense output: o_ref is (tq, G*D); pack each head's slice so
            # the HBM writeback is an unmasked, 128-aligned store.
            G, _, D = acc_sc.shape
            for g in range(G):
                o_ref[:, g * D:(g + 1) * D] = (acc_sc[g] * inv[g]).astype(o_ref.dtype)
        else:
            o_ref[...] = (acc_sc[...] * inv).astype(o_ref.dtype)


def attention(query, key, value, mask=None, dropout=None):
    """Scaled dot-product attention via a flash-style Pallas TPU kernel.

    Matches the reference forward: `mask` is accepted but never applied (the
    reference forward ignores it); dropout is only applied in the reference
    when a dropout module is explicitly passed, which is not supported here.
    """
    del mask  # the reference forward never applies the mask
    if dropout is not None:
        # TODO(synk): dropout(p_attn) path is not implemented.
        raise NotImplementedError("dropout on attention probabilities is not implemented")

    orig_shape = query.shape
    S, D = orig_shape[-2], orig_shape[-1]
    lead = 1
    for d in orig_shape[:-2]:
        lead *= d

    q = query.reshape(lead, S, D)
    k = key.reshape(lead, S, D)
    v = value.reshape(lead, S, D)

    gen = _tpu_generation()
    itemsize = jnp.dtype(query.dtype).itemsize

    S_pad, tq, tk = _pick_tiles(S)
    if S_pad != S:
        pad = ((0, 0), (0, S_pad - S), (0, 0))
        q = jnp.pad(q, pad)
        k = jnp.pad(k, pad)
        v = jnp.pad(v, pad)

    n_qtiles = S_pad // tq
    kv_steps = S_pad // tk
    kv_bufs = 3 if kv_steps >= 3 else 2

    # bf16 exp only on generations with a bf16 EUP (v6e / v7x) and bf16 inputs.
    exp_dtype = (jnp.bfloat16
                 if (query.dtype == jnp.bfloat16 and gen is not None and gen >= 6)
                 else jnp.float32)
    exp_itemsize = jnp.dtype(exp_dtype).itemsize

    # Per-head VMEM footprint: pipelined I/O blocks + f32 scratch + the
    # (tq, tk) score / probability intermediates (the largest live buffers).
    per_head = (2 * tq * D * itemsize                      # q block (double buffered)
                + 2 * kv_bufs * tk * D * itemsize          # k + v blocks
                + 2 * tq * D * itemsize                    # out block (double buffered)
                + tq * D * 4 + 2 * tq * 4                  # f32 acc + m/l scratch
                + tq * D * itemsize                        # pre-scaled Q scratch
                + tq * tk * (4 + exp_itemsize + itemsize)) # s(f32) + p + p-for-MXU

    # Keep the whole working set comfortably under v7x's 64 MiB physical VMEM.
    G = _pick_head_group(lead, D, per_head, budget_bytes=32 << 20,
                         n_qtiles=n_qtiles,
                         need_two_parallel=(gen is not None and gen >= 7))

    packed_out = (D % 128 != 0) and ((G * D) % 128 == 0) and G > 1
    grid = (lead // G, n_qtiles, kv_steps)
    scale = 1.0 / math.sqrt(D)

    kernel = functools.partial(
        _flash_attn_kernel,
        scale=scale,
        kv_len=(S if S_pad != S else None),
        block_k=tk,
        exp_dtype=exp_dtype,
        packed_out=packed_out,
    )

    # K/V blocks change every inner (kv) step; give them an extra pipeline
    # buffer when there are enough steps to benefit.
    kv_spec_kwargs = {}
    if kv_steps >= 3:
        kv_spec_kwargs["pipeline_mode"] = pl.Buffered(kv_bufs)

    in_specs = [
        pl.BlockSpec((G, tq, D), lambda b, qi, ki: (b, qi, 0)),
        pl.BlockSpec((G, tk, D), lambda b, qi, ki: (b, ki, 0), **kv_spec_kwargs),
        pl.BlockSpec((G, tk, D), lambda b, qi, ki: (b, ki, 0), **kv_spec_kwargs),
    ]

    if packed_out:
        out_shape = jax.ShapeDtypeStruct((lead // G, S_pad, G * D), query.dtype)
        out_spec = pl.BlockSpec((None, tq, G * D), lambda b, qi, ki: (b, qi, 0))
    else:
        out_shape = jax.ShapeDtypeStruct((lead, S_pad, D), query.dtype)
        out_spec = pl.BlockSpec((G, tq, D), lambda b, qi, ki: (b, qi, 0))

    vmem_need = G * per_head
    vmem_limit = int(min(max(vmem_need + (8 << 20), 20 << 20), 48 << 20))

    cost = pl.CostEstimate(
        flops=int(4 * lead * S_pad * S_pad * D),
        transcendentals=int(lead * S_pad * S_pad),
        # q read + out write + K/V restreamed once per q-tile.
        bytes_accessed=int(lead * S_pad * D * itemsize * (2 + 2 * n_qtiles)),
    )

    out = pl.pallas_call(
        kernel,
        out_shape=out_shape,
        grid_spec=pltpu.PrefetchScalarGridSpec(
            num_scalar_prefetch=0,
            grid=grid,
            in_specs=in_specs,
            out_specs=out_spec,
            scratch_shapes=[
                pltpu.VMEM((G, tq, 1), jnp.float32),    # running max
                pltpu.VMEM((G, tq, 1), jnp.float32),    # running sum
                pltpu.VMEM((G, tq, D), jnp.float32),    # output accumulator
                pltpu.VMEM((G, tq, D), query.dtype),    # pre-scaled Q
            ],
        ),
        compiler_params=pltpu.CompilerParams(
            dimension_semantics=("parallel", "parallel", "arbitrary"),
            vmem_limit_bytes=vmem_limit,
        ),
        cost_estimate=cost,
    )(q, k, v)

    if packed_out:
        out = out.reshape(lead // G, S_pad, G, D)
        out = jnp.transpose(out, (0, 2, 1, 3))
        out = out.reshape(lead, S_pad, D)
    if S_pad != S:
        out = out[:, :S, :]
    return out.reshape(orig_shape)


def _attention_ref(query, key, value):
    d_k = key.shape[-1]
    scores = jnp.einsum("...qd,...kd->...qk", query, key) / math.sqrt(d_k)
    p = jax.nn.softmax(scores, axis=-1)
    return jnp.einsum("...qk,...kd->...qd", p, value)


if __name__ == "__main__":
    key0 = jax.random.PRNGKey(0)

    # Case 1: aligned small shapes (batch=2, heads=4, seq=8, head_dim=32).
    B, H, S, D = 2, 4, 8, 32
    kq, kk, kv = jax.random.split(key0, 3)
    q = jax.random.normal(kq, (B, H, S, D), dtype=jnp.float32)
    k = jax.random.normal(kk, (B, H, S, D), dtype=jnp.float32)
    v = jax.random.normal(kv, (B, H, S, D), dtype=jnp.float32)

    out = attention(q, k, v)
    jax.block_until_ready(out)
    ref = _attention_ref(q, k, v)
    assert out.shape == (B, H, S, D)
    assert jnp.allclose(out, ref, atol=1e-4, rtol=1e-4), "mismatch vs reference (aligned)"

    # Case 2: awkward sequence length (exercises padding + KV masking path).
    S2 = 20
    kq2, kk2, kv2 = jax.random.split(jax.random.PRNGKey(1), 3)
    q2 = jax.random.normal(kq2, (B, H, S2, D), dtype=jnp.float32)
    k2 = jax.random.normal(kk2, (B, H, S2, D), dtype=jnp.float32)
    v2 = jax.random.normal(kv2, (B, H, S2, D), dtype=jnp.float32)

    out2 = attention(q2, k2, v2)
    jax.block_until_ready(out2)
    ref2 = _attention_ref(q2, k2, v2)
    assert out2.shape == (B, H, S2, D)
    assert jnp.allclose(out2, ref2, atol=1e-4, rtol=1e-4), "mismatch vs reference (padded)"

    print("KERNEL_OK")
</pallas_src>

<mosaic_0001>
module attributes {stable_mosaic.version = 11 : i64} {
  func.func @_flash_attn_kernel(%arg0: i32, %arg1: i32, %arg2: i32, %arg3: memref<8x8x32xf32, #tpu.memory_space<vmem>>, %arg4: memref<8x8x32xf32, #tpu.memory_space<vmem>>, %arg5: memref<8x8x32xf32, #tpu.memory_space<vmem>>, %arg6: memref<1x8x256xf32, #tpu.memory_space<vmem>>, %arg7: memref<8x8x1xf32, #tpu.memory_space<vmem>>, %arg8: memref<8x8x1xf32, #tpu.memory_space<vmem>>, %arg9: memref<8x8x32xf32, #tpu.memory_space<vmem>>, %arg10: memref<8x8x32xf32, #tpu.memory_space<vmem>>) attributes {dimension_semantics = [#tpu.dimension_semantics<parallel>, #tpu.dimension_semantics<parallel>, #tpu.dimension_semantics<arbitrary>], iteration_bounds = array<i64: 1, 1, 1>, scalar_prefetch = 0 : i64, scratch_operands = 4 : i64, tpu.core_type = #tpu.core_type<tc>, window_params = [{transform_indices = @transform_0, window_bounds = array<i64: 8, 8, 32>}, {transform_indices = @transform_1, window_bounds = array<i64: 8, 8, 32>}, {transform_indices = @transform_2, window_bounds = array<i64: 8, 8, 32>}, {transform_indices = @transform_3, window_bounds = array<i64: 1, 8, 256>}]} {
    %c0_i32 = arith.constant 0 : i32
    %0 = arith.cmpi eq, %arg2, %c0_i32 : i32
    %1 = arith.extui %0 : i1 to i32
    %c0_i32_0 = arith.constant 0 : i32
    %2 = arith.cmpi ne, %1, %c0_i32_0 : i32
    scf.if %2 {
      %cst_32 = arith.constant 0xFF800000 : f32
      %32 = vector.broadcast %cst_32 : f32 to vector<8x8x1xf32>
      %c0_33 = arith.constant 0 : index
      %c0_34 = arith.constant 0 : index
      %c0_35 = arith.constant 0 : index
      %33 = vector.load %arg7[%c0_33, %c0_34, %c0_35] : memref<8x8x1xf32, #tpu.memory_space<vmem>>, vector<8x8x1xf32>
      tpu.vector_store %arg7[%c0_33, %c0_34, %c0_35], %32 {strides = array<i32>} : memref<8x8x1xf32, #tpu.memory_space<vmem>>, vector<8x8x1xf32>,
      %cst_36 = arith.constant 0.000000e+00 : f32
      %34 = vector.broadcast %cst_36 : f32 to vector<8x8x1xf32>
      %c0_37 = arith.constant 0 : index
      %c0_38 = arith.constant 0 : index
      %c0_39 = arith.constant 0 : index
      %35 = vector.load %arg8[%c0_37, %c0_38, %c0_39] : memref<8x8x1xf32, #tpu.memory_space<vmem>>, vector<8x8x1xf32>
      tpu.vector_store %arg8[%c0_37, %c0_38, %c0_39], %34 {strides = array<i32>} : memref<8x8x1xf32, #tpu.memory_space<vmem>>, vector<8x8x1xf32>,
      %cst_40 = arith.constant 0.000000e+00 : f32
      %36 = vector.broadcast %cst_40 : f32 to vector<8x8x32xf32>
      %c0_41 = arith.constant 0 : index
      %c0_42 = arith.constant 0 : index
      %c0_43 = arith.constant 0 : index
      %37 = vector.load %arg9[%c0_41, %c0_42, %c0_43] : memref<8x8x32xf32, #tpu.memory_space<vmem>>, vector<8x8x32xf32>
      tpu.vector_store %arg9[%c0_41, %c0_42, %c0_43], %36 {strides = array<i32>} : memref<8x8x32xf32, #tpu.memory_space<vmem>>, vector<8x8x32xf32>,
      %c0_44 = arith.constant 0 : index
      %c0_45 = arith.constant 0 : index
      %c0_46 = arith.constant 0 : index
      %38 = vector.load %arg3[%c0_44, %c0_45, %c0_46] : memref<8x8x32xf32, #tpu.memory_space<vmem>>, vector<8x8x32xf32>
      %cst_47 = arith.constant 0.176776692 : f32
      %39 = vector.broadcast %cst_47 : f32 to vector<8x8x32xf32>
      %40 = arith.mulf %38, %39 : vector<8x8x32xf32>
      %c0_48 = arith.constant 0 : index
      %c0_49 = arith.constant 0 : index
      %c0_50 = arith.constant 0 : index
      %41 = vector.load %arg10[%c0_48, %c0_49, %c0_50] : memref<8x8x32xf32, #tpu.memory_space<vmem>>, vector<8x8x32xf32>
      tpu.vector_store %arg10[%c0_48, %c0_49, %c0_50], %40 {strides = array<i32>} : memref<8x8x32xf32, #tpu.memory_space<vmem>>, vector<8x8x32xf32>,
    } else {
    }
    %c0 = arith.constant 0 : index
    %c0_1 = arith.constant 0 : index
    %c0_2 = arith.constant 0 : index
    %3 = vector.load %arg10[%c0, %c0_1, %c0_2] : memref<8x8x32xf32, #tpu.memory_space<vmem>>, vector<8x8x32xf32>
    %c0_3 = arith.constant 0 : index
    %c0_4 = arith.constant 0 : index
    %c0_5 = arith.constant 0 : index
    %4 = vector.load %arg4[%c0_3, %c0_4, %c0_5] : memref<8x8x32xf32, #tpu.memory_space<vmem>>, vector<8x8x32xf32>
    %c0_6 = arith.constant 0 : index
    %c0_7 = arith.constant 0 : index
    %c0_8 = arith.constant 0 : index
    %5 = vector.load %arg5[%c0_6, %c0_7, %c0_8] : memref<8x8x32xf32, #tpu.memory_space<vmem>>, vector<8x8x32xf32>
    %cst = arith.constant dense<0.000000e+00> : vector<8x8x8xf32>
    %6 = tpu.matmul %3, %4, %cst {dimension_numbers = #tpu.dot_dimension_numbers<[2], [2], [1], [1], [0, 0, 0, 1, 1, 1], [0], [0]>} : vector<8x8x32xf32>, vector<8x8x32xf32>, vector<8x8x8xf32> -> vector<8x8x8xf32>
    %c0_9 = arith.constant 0 : index
    %c0_10 = arith.constant 0 : index
    %c0_11 = arith.constant 0 : index
    %7 = vector.load %arg7[%c0_9, %c0_10, %c0_11] : memref<8x8x1xf32, #tpu.memory_space<vmem>>, vector<8x8x1xf32>
    %cst_12 = arith.constant dense<0xFF800000> : vector<8x8xf32>
    %8 = vector.multi_reduction <maximumf>, %6, %cst_12 [2] : vector<8x8x8xf32> to vector<8x8xf32>
    %9 = vector.shape_cast %8 : vector<8x8xf32> to vector<8x8x1xf32>
    %10 = arith.maximumf %7, %9 : vector<8x8x1xf32>
    %11 = arith.subf %7, %10 : vector<8x8x1xf32>
    %12 = math.exp %11 : vector<8x8x1xf32>
    %13 = vector.broadcast %10 : vector<8x8x1xf32> to vector<8x8x8xf32>
    %14 = arith.subf %6, %13 : vector<8x8x8xf32>
    %15 = math.exp %14 : vector<8x8x8xf32>
    %c0_13 = arith.constant 0 : index
    %c0_14 = arith.constant 0 : index
    %c0_15 = arith.constant 0 : index
    %16 = vector.load %arg8[%c0_13, %c0_14, %c0_15] : memref<8x8x1xf32, #tpu.memory_space<vmem>>, vector<8x8x1xf32>
    %17 = arith.mulf %12, %16 : vector<8x8x1xf32>
    %cst_16 = arith.constant dense<0.000000e+00> : vector<8x8xf32>
    %18 = vector.multi_reduction <add>, %15, %cst_16 [2] : vector<8x8x8xf32> to vector<8x8xf32>
    %19 = vector.shape_cast %18 : vector<8x8xf32> to vector<8x8x1xf32>
    %20 = arith.addf %17, %19 : vector<8x8x1xf32>
    %c0_17 = arith.constant 0 : index
    %c0_18 = arith.constant 0 : index
    %c0_19 = arith.constant 0 : index
    %21 = vector.load %arg8[%c0_17, %c0_18, %c0_19] : memref<8x8x1xf32, #tpu.memory_space<vmem>>, vector<8x8x1xf32>
    tpu.vector_store %arg8[%c0_17, %c0_18, %c0_19], %20 {strides = array<i32>} : memref<8x8x1xf32, #tpu.memory_space<vmem>>, vector<8x8x1xf32>,
    %cst_20 = arith.constant dense<0.000000e+00> : vector<8x8x32xf32>
    %22 = tpu.matmul %15, %5, %cst_20 {dimension_numbers = #tpu.dot_dimension_numbers<[2], [1], [1], [2], [0, 0, 0, 1, 1, 2], [0], [0]>} : vector<8x8x8xf32>, vector<8x8x32xf32>, vector<8x8x32xf32> -> vector<8x8x32xf32>
    %c0_21 = arith.constant 0 : index
    %c0_22 = arith.constant 0 : index
    %c0_23 = arith.constant 0 : index
    %23 = vector.load %arg9[%c0_21, %c0_22, %c0_23] : memref<8x8x32xf32, #tpu.memory_space<vmem>>, vector<8x8x32xf32>
    %24 = vector.broadcast %12 : vector<8x8x1xf32> to vector<8x8x32xf32>
    %25 = arith.mulf %24, %23 : vector<8x8x32xf32>
    %26 = arith.addf %25, %22 : vector<8x8x32xf32>
    %c0_24 = arith.constant 0 : index
    %c0_25 = arith.constant 0 : index
    %c0_26 = arith.constant 0 : index
    %27 = vector.load %arg9[%c0_24, %c0_25, %c0_26] : memref<8x8x32xf32, #tpu.memory_space<vmem>>, vector<8x8x32xf32>
    tpu.vector_store %arg9[%c0_24, %c0_25, %c0_26], %26 {strides = array<i32>} : memref<8x8x32xf32, #tpu.memory_space<vmem>>, vector<8x8x32xf32>,
    %c0_27 = arith.constant 0 : index
    %c0_28 = arith.constant 0 : index
    %c0_29 = arith.constant 0 : index
    %28 = vector.load %arg7[%c0_27, %c0_28, %c0_29] : memref<8x8x1xf32, #tpu.memory_space<vmem>>, vector<8x8x1xf32>
    tpu.vector_store %arg7[%c0_27, %c0_28, %c0_29], %10 {strides = array<i32>} : memref<8x8x1xf32, #tpu.memory_space<vmem>>, vector<8x8x1xf32>,
    %c0_i32_30 = arith.constant 0 : i32
    %29 = arith.cmpi eq, %arg2, %c0_i32_30 : i32
    %30 = arith.extui %29 : i1 to i32
    %c0_i32_31 = arith.constant 0 : i32
    %31 = arith.cmpi ne, %30, %c0_i32_31 : i32
    scf.if %31 {
      %c0_32 = arith.constant 0 : index
      %c0_33 = arith.constant 0 : index
      %c0_34 = arith.constant 0 : index
      %32 = vector.load %arg8[%c0_32, %c0_33, %c0_34] : memref<8x8x1xf32, #tpu.memory_space<vmem>>, vector<8x8x1xf32>
      %cst_35 = arith.constant 1.000000e+00 : f32
      %33 = vector.broadcast %cst_35 : f32 to vector<8x8x1xf32>
      %34 = arith.divf %33, %32 : vector<8x8x1xf32>
      %c0_36 = arith.constant 0 : index
      %c0_37 = arith.constant 0 : index
      %c0_38 = arith.constant 0 : index
      %35 = vector.load %arg9[%c0_36, %c0_37, %c0_38] : memref<8x8x32xf32, #tpu.memory_space<vmem>>, vector<1x8x32xf32>
      %36 = vector.shape_cast %35 : vector<1x8x32xf32> to vector<8x32xf32>
      %37 = vector.extract_strided_slice %34 {offsets = [0, 0, 0], sizes = [1, 8, 1], strides = [1, 1, 1]} : vector<8x8x1xf32> to vector<1x8x1xf32>
      %38 = vector.shape_cast %37 : vector<1x8x1xf32> to vector<8x1xf32>
      %39 = vector.broadcast %38 : vector<8x1xf32> to vector<8x32xf32>
      %40 = arith.mulf %36, %39 : vector<8x32xf32>
      %c0_39 = arith.constant 0 : index
      %c0_40 = arith.constant 0 : index
      %c0_41 = arith.constant 0 : index
      %41 = vector.load %arg6[%c0_39, %c0_40, %c0_41] : memref<1x8x256xf32, #tpu.memory_space<vmem>>, vector<1x8x32xf32>
      %42 = vector.shape_cast %41 : vector<1x8x32xf32> to vector<8x32xf32>
      %43 = vector.shape_cast %40 : vector<8x32xf32> to vector<1x8x32xf32>
      tpu.vector_store %arg6[%c0_39, %c0_40, %c0_41], %43 {strides = array<i32>} : memref<1x8x256xf32, #tpu.memory_space<vmem>>, vector<1x8x32xf32>,
      %c1 = arith.constant 1 : index
      %c0_42 = arith.constant 0 : index
      %c0_43 = arith.constant 0 : index
      %44 = vector.load %arg9[%c1, %c0_42, %c0_43] : memref<8x8x32xf32, #tpu.memory_space<vmem>>, vector<1x8x32xf32>
      %45 = vector.shape_cast %44 : vector<1x8x32xf32> to vector<8x32xf32>
      %46 = vector.extract_strided_slice %34 {offsets = [1, 0, 0], sizes = [1, 8, 1], strides = [1, 1, 1]} : vector<8x8x1xf32> to vector<1x8x1xf32>
      %47 = vector.shape_cast %46 : vector<1x8x1xf32> to vector<8x1xf32>
      %48 = vector.broadcast %47 : vector<8x1xf32> to vector<8x32xf32>
      %49 = arith.mulf %45, %48 : vector<8x32xf32>
      %c0_44 = arith.constant 0 : index
      %c0_45 = arith.constant 0 : index
      %c32 = arith.constant 32 : index
      %50 = vector.load %arg6[%c0_44, %c0_45, %c32] : memref<1x8x256xf32, #tpu.memory_space<vmem>>, vector<1x8x32xf32>
      %51 = vector.shape_cast %50 : vector<1x8x32xf32> to vector<8x32xf32>
      %52 = vector.shape_cast %49 : vector<8x32xf32> to vector<1x8x32xf32>
      tpu.vector_store %arg6[%c0_44, %c0_45, %c32], %52 {strides = array<i32>} : memref<1x8x256xf32, #tpu.memory_space<vmem>>, vector<1x8x32xf32>,
      %c2 = arith.constant 2 : index
      %c0_46 = arith.constant 0 : index
      %c0_47 = arith.constant 0 : index
      %53 = vector.load %arg9[%c2, %c0_46, %c0_47] : memref<8x8x32xf32, #tpu.memory_space<vmem>>, vector<1x8x32xf32>
      %54 = vector.shape_cast %53 : vector<1x8x32xf32> to vector<8x32xf32>
      %55 = vector.extract_strided_slice %34 {offsets = [2, 0, 0], sizes = [1, 8, 1], strides = [1, 1, 1]} : vector<8x8x1xf32> to vector<1x8x1xf32>
      %56 = vector.shape_cast %55 : vector<1x8x1xf32> to vector<8x1xf32>
      %57 = vector.broadcast %56 : vector<8x1xf32> to vector<8x32xf32>
      %58 = arith.mulf %54, %57 : vector<8x32xf32>
      %c0_48 = arith.constant 0 : index
      %c0_49 = arith.constant 0 : index
      %c64 = arith.constant 64 : index
      %59 = vector.load %arg6[%c0_48, %c0_49, %c64] : memref<1x8x256xf32, #tpu.memory_space<vmem>>, vector<1x8x32xf32>
      %60 = vector.shape_cast %59 : vector<1x8x32xf32> to vector<8x32xf32>
      %61 = vector.shape_cast %58 : vector<8x32xf32> to vector<1x8x32xf32>
      tpu.vector_store %arg6[%c0_48, %c0_49, %c64], %61 {strides = array<i32>} : memref<1x8x256xf32, #tpu.memory_space<vmem>>, vector<1x8x32xf32>,
      %c3 = arith.constant 3 : index
      %c0_50 = arith.constant 0 : index
      %c0_51 = arith.constant 0 : index
      %62 = vector.load %arg9[%c3, %c0_50, %c0_51] : memref<8x8x32xf32, #tpu.memory_space<vmem>>, vector<1x8x32xf32>
      %63 = vector.shape_cast %62 : vector<1x8x32xf32> to vector<8x32xf32>
      %64 = vector.extract_strided_slice %34 {offsets = [3, 0, 0], sizes = [1, 8, 1], strides = [1, 1, 1]} : vector<8x8x1xf32> to vector<1x8x1xf32>
      %65 = vector.shape_cast %64 : vector<1x8x1xf32> to vector<8x1xf32>
      %66 = vector.broadcast %65 : vector<8x1xf32> to vector<8x32xf32>
      %67 = arith.mulf %63, %66 : vector<8x32xf32>
      %c0_52 = arith.constant 0 : index
      %c0_53 = arith.constant 0 : index
      %c96 = arith.constant 96 : index
      %68 = vector.load %arg6[%c0_52, %c0_53, %c96] : memref<1x8x256xf32, #tpu.memory_space<vmem>>, vector<1x8x32xf32>
      %69 = vector.shape_cast %68 : vector<1x8x32xf32> to vector<8x32xf32>
      %70 = vector.shape_cast %67 : vector<8x32xf32> to vector<1x8x32xf32>
      tpu.vector_store %arg6[%c0_52, %c0_53, %c96], %70 {strides = array<i32>} : memref<1x8x256xf32, #tpu.memory_space<vmem>>, vector<1x8x32xf32>,
      %c4 = arith.constant 4 : index
      %c0_54 = arith.constant 0 : index
      %c0_55 = arith.constant 0 : index
      %71 = vector.load %arg9[%c4, %c0_54, %c0_55] : memref<8x8x32xf32, #tpu.memory_space<vmem>>, vector<1x8x32xf32>
      %72 = vector.shape_cast %71 : vector<1x8x32xf32> to vector<8x32xf32>
      %73 = vector.extract_strided_slice %34 {offsets = [4, 0, 0], sizes = [1, 8, 1], strides = [1, 1, 1]} : vector<8x8x1xf32> to vector<1x8x1xf32>
      %74 = vector.shape_cast %73 : vector<1x8x1xf32> to vector<8x1xf32>
      %75 = vector.broadcast %74 : vector<8x1xf32> to vector<8x32xf32>
      %76 = arith.mulf %72, %75 : vector<8x32xf32>
      %c0_56 = arith.constant 0 : index
      %c0_57 = arith.constant 0 : index
      %c128 = arith.constant 128 : index
      %77 = vector.load %arg6[%c0_56, %c0_57, %c128] : memref<1x8x256xf32, #tpu.memory_space<vmem>>, vector<1x8x32xf32>
      %78 = vector.shape_cast %77 : vector<1x8x32xf32> to vector<8x32xf32>
      %79 = vector.shape_cast %76 : vector<8x32xf32> to vector<1x8x32xf32>
      tpu.vector_store %arg6[%c0_56, %c0_57, %c128], %79 {strides = array<i32>} : memref<1x8x256xf32, #tpu.memory_space<vmem>>, vector<1x8x32xf32>,
      %c5 = arith.constant 5 : index
      %c0_58 = arith.constant 0 : index
      %c0_59 = arith.constant 0 : index
      %80 = vector.load %arg9[%c5, %c0_58, %c0_59] : memref<8x8x32xf32, #tpu.memory_space<vmem>>, vector<1x8x32xf32>
      %81 = vector.shape_cast %80 : vector<1x8x32xf32> to vector<8x32xf32>
      %82 = vector.extract_strided_slice %34 {offsets = [5, 0, 0], sizes = [1, 8, 1], strides = [1, 1, 1]} : vector<8x8x1xf32> to vector<1x8x1xf32>
      %83 = vector.shape_cast %82 : vector<1x8x1xf32> to vector<8x1xf32>
      %84 = vector.broadcast %83 : vector<8x1xf32> to vector<8x32xf32>
      %85 = arith.mulf %81, %84 : vector<8x32xf32>
      %c0_60 = arith.constant 0 : index
      %c0_61 = arith.constant 0 : index
      %c160 = arith.constant 160 : index
      %86 = vector.load %arg6[%c0_60, %c0_61, %c160] : memref<1x8x256xf32, #tpu.memory_space<vmem>>, vector<1x8x32xf32>
      %87 = vector.shape_cast %86 : vector<1x8x32xf32> to vector<8x32xf32>
      %88 = vector.shape_cast %85 : vector<8x32xf32> to vector<1x8x32xf32>
      tpu.vector_store %arg6[%c0_60, %c0_61, %c160], %88 {strides = array<i32>} : memref<1x8x256xf32, #tpu.memory_space<vmem>>, vector<1x8x32xf32>,
      %c6 = arith.constant 6 : index
      %c0_62 = arith.constant 0 : index
      %c0_63 = arith.constant 0 : index
      %89 = vector.load %arg9[%c6, %c0_62, %c0_63] : memref<8x8x32xf32, #tpu.memory_space<vmem>>, vector<1x8x32xf32>
      %90 = vector.shape_cast %89 : vector<1x8x32xf32> to vector<8x32xf32>
      %91 = vector.extract_strided_slice %34 {offsets = [6, 0, 0], sizes = [1, 8, 1], strides = [1, 1, 1]} : vector<8x8x1xf32> to vector<1x8x1xf32>
      %92 = vector.shape_cast %91 : vector<1x8x1xf32> to vector<8x1xf32>
      %93 = vector.broadcast %92 : vector<8x1xf32> to vector<8x32xf32>
      %94 = arith.mulf %90, %93 : vector<8x32xf32>
      %c0_64 = arith.constant 0 : index
      %c0_65 = arith.constant 0 : index
      %c192 = arith.constant 192 : index
      %95 = vector.load %arg6[%c0_64, %c0_65, %c192] : memref<1x8x256xf32, #tpu.memory_space<vmem>>, vector<1x8x32xf32>
      %96 = vector.shape_cast %95 : vector<1x8x32xf32> to vector<8x32xf32>
      %97 = vector.shape_cast %94 : vector<8x32xf32> to vector<1x8x32xf32>
      tpu.vector_store %arg6[%c0_64, %c0_65, %c192], %97 {strides = array<i32>} : memref<1x8x256xf32, #tpu.memory_space<vmem>>, vector<1x8x32xf32>,
      %c7 = arith.constant 7 : index
      %c0_66 = arith.constant 0 : index
      %c0_67 = arith.constant 0 : index
      %98 = vector.load %arg9[%c7, %c0_66, %c0_67] : memref<8x8x32xf32, #tpu.memory_space<vmem>>, vector<1x8x32xf32>
      %99 = vector.shape_cast %98 : vector<1x8x32xf32> to vector<8x32xf32>
      %100 = vector.extract_strided_slice %34 {offsets = [7, 0, 0], sizes = [1, 8, 1], strides = [1, 1, 1]} : vector<8x8x1xf32> to vector<1x8x1xf32>
      %101 = vector.shape_cast %100 : vector<1x8x1xf32> to vector<8x1xf32>
      %102 = vector.broadcast %101 : vector<8x1xf32> to vector<8x32xf32>
      %103 = arith.mulf %99, %102 : vector<8x32xf32>
      %c0_68 = arith.constant 0 : index
      %c0_69 = arith.constant 0 : index
      %c224 = arith.constant 224 : index
      %104 = vector.load %arg6[%c0_68, %c0_69, %c224] : memref<1x8x256xf32, #tpu.memory_space<vmem>>, vector<1x8x32xf32>
      %105 = vector.shape_cast %104 : vector<1x8x32xf32> to vector<8x32xf32>
      %106 = vector.shape_cast %103 : vector<8x32xf32> to vector<1x8x32xf32>
      tpu.vector_store %arg6[%c0_68, %c0_69, %c224], %106 {strides = array<i32>} : memref<1x8x256xf32, #tpu.memory_space<vmem>>, vector<1x8x32xf32>,
    } else {
    }
    return
  }
  func.func @transform_0(%arg0: i32, %arg1: i32, %arg2: i32) -> (i32, i32, i32) {
    %c0_i32 = arith.constant 0 : i32
    %c0_i32_0 = arith.constant 0 : i32
    return %arg0, %arg1, %c0_i32 : i32, i32, i32
  }
  func.func @transform_1(%arg0: i32, %arg1: i32, %arg2: i32) -> (i32, i32, i32) {
    %c0_i32 = arith.constant 0 : i32
    %c0_i32_0 = arith.constant 0 : i32
    return %arg0, %arg2, %c0_i32 : i32, i32, i32
  }
  func.func @transform_2(%arg0: i32, %arg1: i32, %arg2: i32) -> (i32, i32, i32) {
    %c0_i32 = arith.constant 0 : i32
    %c0_i32_0 = arith.constant 0 : i32
    return %arg0, %arg2, %c0_i32 : i32, i32, i32
  }
  func.func @transform_3(%arg0: i32, %arg1: i32, %arg2: i32) -> (i32, i32, i32) {
    %c0_i32 = arith.constant 0 : i32
    %c0_i32_0 = arith.constant 0 : i32
    return %arg0, %arg1, %c0_i32 : i32, i32, i32
  }
}

</mosaic_0001>

<llo_original>
// kernel: tpu_custom_call.1
$region0: #{tpu_custom_call.1}
  #allocation0 [shape = 'u32[]', space=smem, size = 0x4, offset = 0x4, fixed_abs, tag = 'smem constant byte address 0x4 - core index']
  #allocation1 [shape = 'u32[72,128]{1,0:T(1,128)}', space=vmem, size = 0x9000, scoped, tag = 'internal scratch']
  #allocation2 [shape = 'f32[8,8,1]{2,1,0:T(8,128)}', space=vmem, size = 0x8000, scoped, tag = 'scratch operand']
  #allocation3 [shape = 'f32[8,8,1]{2,1,0:T(8,128)}', space=vmem, size = 0x8000, scoped, tag = 'scratch operand']
  #allocation4 [shape = 'f32[8,8,32]{2,1,0:T(8,128)}', space=vmem, size = 0x8000, scoped, tag = 'scratch operand']
  #allocation5 [shape = 'f32[8,8,32]{2,1,0:T(8,128)}', space=vmem, size = 0x8000, scoped, tag = 'scratch operand']
  %s0 = inlined_call_operand.hbm [shape: f32[8,8,32], index: 0, kind: input, shape index: {}]
  %s1 = inlined_call_operand.hbm [shape: f32[8,8,32], index: 1, kind: input, shape index: {}]
  %s2 = inlined_call_operand.hbm [shape: f32[8,8,32], index: 2, kind: input, shape index: {}]
  %s3 = inlined_call_operand.hbm [shape: f32[1,8,256], index: 3, kind: output, shape index: {}]
  %s4 = sld [smem:[#allocation0]]
  $region42: #{tpu_custom_call.1} parent=0
    _
  %s6 = ssub.s32 1, %s4
  %s7 = scalar_select 0, %s6, %s4
  $region1: #{tpu_custom_call.1} parent=0
    #allocation6 [shape = 'u8[32768]{0}', space=vmem, size = 0x8000, scoped, tag = 'input window, operand 0, single buffered']
    #allocation7 [shape = 's32[1]{0}', space=sflag, size = 0x4, scoped, tag = 'scoped memory for tpu_custom_call.1']
    #allocation8 [shape = 's32[1]{0}', space=sflag, size = 0x4, scoped, tag = 'scoped memory for tpu_custom_call.1']
    #allocation9 [shape = 'u8[32768]{0}', space=vmem, size = 0x8000, scoped, tag = 'input window, operand 1, single buffered']
    #allocation10 [shape = 's32[1]{0}', space=sflag, size = 0x4, scoped, tag = 'scoped memory for tpu_custom_call.1']
    #allocation11 [shape = 'u8[32768]{0}', space=vmem, size = 0x8000, scoped, tag = 'input window, operand 2, single buffered']
    #allocation12 [shape = 'u8[8192]{0}', space=vmem, size = 0x2000, scoped, tag = 'output window, operand 0, single buffered']
    %8 = vsyncpa [#allocation7], 0
    %9 = vsyncpa [#allocation10], 0
    %10 = vsyncpa [#allocation8], 0
    // Predicated region
    $region2: #{tpu_custom_call.1} parent=1 // pred_check
      _
    $region3: #{tpu_custom_call.1} parent=1 // pred_check_branch
      %12 = sbr.rel (0) target = $region5
    $region4: #{tpu_custom_call.1} parent=1 // pred_region
      %14 = vsyncadd [#allocation7], 0
      %s15 = sshll.u32 %s0, 4
      %s16 = int_to_ptr.hbm [resolvable:$true] %s15
      %s17 = sshll.u32 [#allocation6], 4
      %s18 = int_to_ptr.vmem [resolvable:$true] %s17
      %23 = dma.hbm_to_vmem [thread:$0]  %s16, 1024, %s18, [#allocation7], 128, 128, 8
    $region5: #{tpu_custom_call.1} parent=1 // pred_fallthru
      _
    // Predicated region
    $region6: #{tpu_custom_call.1} parent=1 // pred_check
      _
    $region7: #{tpu_custom_call.1} parent=1 // pred_check_branch
      %25 = sbr.rel (0) target = $region9
    $region8: #{tpu_custom_call.1} parent=1 // pred_region
      %27 = vsyncadd [#allocation10], 0
      %s28 = sshll.u32 %s1, 4
      %s29 = int_to_ptr.hbm [resolvable:$true] %s28
      %s30 = sshll.u32 [#allocation9], 4
      %s31 = int_to_ptr.vmem [resolvable:$true] %s30
      %36 = dma.hbm_to_vmem [thread:$0]  %s29, 1024, %s31, [#allocation10], 128, 128, 8
    $region9: #{tpu_custom_call.1} parent=1 // pred_fallthru
      _
    // Predicated region
    $region10: #{tpu_custom_call.1} parent=1 // pred_check
      _
    $region11: #{tpu_custom_call.1} parent=1 // pred_check_branch
      %38 = sbr.rel (0) target = $region13
    $region12: #{tpu_custom_call.1} parent=1 // pred_region
      %40 = vsyncadd [#allocation10], 0
      %s41 = sshll.u32 %s2, 4
      %s42 = int_to_ptr.hbm [resolvable:$true] %s41
      %s43 = sshll.u32 [#allocation11], 4
      %s44 = int_to_ptr.vmem [resolvable:$true] %s43
      %49 = dma.hbm_to_vmem [thread:$0]  %s42, 1024, %s44, [#allocation10], 128, 128, 8
    $region13: #{tpu_custom_call.1} parent=1 // pred_fallthru
      _
    // Predicated region
    $region14: #{tpu_custom_call.1} parent=1 // pred_check
      _
    $region15: #{tpu_custom_call.1} parent=1 // pred_check_branch
      %51 = sbr.rel (0) target = $region17
    $region16: #{tpu_custom_call.1} parent=1 // pred_region
      %53 = dma.done [#allocation7], 1024
    $region17: #{tpu_custom_call.1} parent=1 // pred_fallthru
      _
    // Predicated region
    $region18: #{tpu_custom_call.1} parent=1 // pred_check
      _
    $region19: #{tpu_custom_call.1} parent=1 // pred_check_branch
      %55 = sbr.rel (0) target = $region21
    $region20: #{tpu_custom_call.1} parent=1 // pred_region
      %57 = dma.done [#allocation10], 1024
    $region21: #{tpu_custom_call.1} parent=1 // pred_fallthru
      _
    // Predicated region
    $region22: #{tpu_custom_call.1} parent=1 // pred_check
      _
    $region23: #{tpu_custom_call.1} parent=1 // pred_check_branch
      %59 = sbr.rel (0) target = $region25
    $region24: #{tpu_custom_call.1} parent=1 // pred_region
      %61 = dma.done [#allocation10], 1024
    $region25: #{tpu_custom_call.1} parent=1 // pred_fallthru
      _
    %p62 = scmp.eq.s32.totalorder 0, 0
    // Predicated region
    $region26: #{tpu_custom_call.1} parent=1 // pred_check
      %p63 = pneg %p62
    $region27: #{tpu_custom_call.1} parent=1 // pred_check_branch
      %65 = sbr.rel (%p63) target = $region29
    $region28: #{tpu_custom_call.1} parent=1 // pred_region
      %vm66 = vcmask 7168
      %67 = vst.msk [vmem:[#allocation2] sm:$0xff] %vm66, -inf
      %68 = vst.msk [vmem:[#allocation2 + $0x8] sm:$0xff] %vm66, -inf
      %69 = vst.msk [vmem:[#allocation2 + $0x10] sm:$0xff] %vm66, -inf
      %70 = vst.msk [vmem:[#allocation2 + $0x18] sm:$0xff] %vm66, -inf
      %71 = vst.msk [vmem:[#allocation2 + $0x20] sm:$0xff] %vm66, -inf
      %72 = vst.msk [vmem:[#allocation2 + $0x28] sm:$0xff] %vm66, -inf
      %73 = vst.msk [vmem:[#allocation2 + $0x30] sm:$0xff] %vm66, -inf
      %74 = vst.msk [vmem:[#allocation2 + $0x38] sm:$0xff] %vm66, -inf
      %75 = vst.msk [vmem:[#allocation3] sm:$0xff] %vm66, 0.0
      %76 = vst.msk [vmem:[#allocation3 + $0x8] sm:$0xff] %vm66, 0.0
      %77 = vst.msk [vmem:[#allocation3 + $0x10] sm:$0xff] %vm66, 0.0
      %78 = vst.msk [vmem:[#allocation3 + $0x18] sm:$0xff] %vm66, 0.0
      %79 = vst.msk [vmem:[#allocation3 + $0x20] sm:$0xff] %vm66, 0.0
      %80 = vst.msk [vmem:[#allocation3 + $0x28] sm:$0xff] %vm66, 0.0
      %81 = vst.msk [vmem:[#allocation3 + $0x30] sm:$0xff] %vm66, 0.0
      %82 = vst.msk [vmem:[#allocation3 + $0x38] sm:$0xff] %vm66, 0.0
      %vm83 = vcmask 261120
      %84 = vst.msk [vmem:[#allocation4] sm:$0xff] %vm83, 0.0
      %85 = vst.msk [vmem:[#allocation4 + $0x8] sm:$0xff] %vm83, 0.0
      %86 = vst.msk [vmem:[#allocation4 + $0x10] sm:$0xff] %vm83, 0.0
      %87 = vst.msk [vmem:[#allocation4 + $0x18] sm:$0xff] %vm83, 0.0
      %88 = vst.msk [vmem:[#allocation4 + $0x20] sm:$0xff] %vm83, 0.0
      %89 = vst.msk [vmem:[#allocation4 + $0x28] sm:$0xff] %vm83, 0.0
      %90 = vst.msk [vmem:[#allocation4 + $0x30] sm:$0xff] %vm83, 0.0
      %91 = vst.msk [vmem:[#allocation4 + $0x38] sm:$0xff] %vm83, 0.0
      %v92 = vld [vmem:[#allocation6] sm:$0xff]
      %v93 = vld [vmem:[#allocation6 + $0x8] sm:$0xff]
      %v94 = vld [vmem:[#allocation6 + $0x10] sm:$0xff]
      %v95 = vld [vmem:[#allocation6 + $0x18] sm:$0xff]
      %v96 = vld [vmem:[#allocation6 + $0x20] sm:$0xff]
      %v97 = vld [vmem:[#allocation6 + $0x28] sm:$0xff]
      %v98 = vld [vmem:[#allocation6 + $0x30] sm:$0xff]
      %v99 = vld [vmem:[#allocation6 + $0x38] sm:$0xff]
      %v100 = vmul.f32 %v92, 0.17677669
      %v101 = vmul.f32 %v93, 0.17677669
      %v102 = vmul.f32 %v94, 0.17677669
      %v103 = vmul.f32 %v95, 0.17677669
      %v104 = vmul.f32 %v96, 0.17677669
      %v105 = vmul.f32 %v97, 0.17677669
      %v106 = vmul.f32 %v98, 0.17677669
      %v107 = vmul.f32 %v99, 0.17677669
      %108 = vst.msk [vmem:[#allocation5] sm:$0xff] %vm83, %v100
      %109 = vst.msk [vmem:[#allocation5 + $0x8] sm:$0xff] %vm83, %v101
      %110 = vst.msk [vmem:[#allocation5 + $0x10] sm:$0xff] %vm83, %v102
      %111 = vst.msk [vmem:[#allocation5 + $0x18] sm:$0xff] %vm83, %v103
      %112 = vst.msk [vmem:[#allocation5 + $0x20] sm:$0xff] %vm83, %v104
      %113 = vst.msk [vmem:[#allocation5 + $0x28] sm:$0xff] %vm83, %v105
      %114 = vst.msk [vmem:[#allocation5 + $0x30] sm:$0xff] %vm83, %v106
      %115 = vst.msk [vmem:[#allocation5 + $0x38] sm:$0xff] %vm83, %v107
    $region29: #{tpu_custom_call.1} parent=1 // pred_fallthru
      _
    %v116 = vld [vmem:[#allocation5] sm:$0xff]
    %v117 = vld [vmem:[#allocation5 + $0x8] sm:$0xff]
    %v118 = vld [vmem:[#allocation5 + $0x10] sm:$0xff]
    %v119 = vld [vmem:[#allocation5 + $0x18] sm:$0xff]
    %v120 = vld [vmem:[#allocation5 + $0x20] sm:$0xff]
    %v121 = vld [vmem:[#allocation5 + $0x28] sm:$0xff]
    %v122 = vld [vmem:[#allocation5 + $0x30] sm:$0xff]
    %v123 = vld [vmem:[#allocation5 + $0x38] sm:$0xff]
    %v124 = vld [vmem:[#allocation9] sm:$0xff]
    %v125 = vld [vmem:[#allocation9 + $0x8] sm:$0xff]
    %v126 = vld [vmem:[#allocation9 + $0x10] sm:$0xff]
    %v127 = vld [vmem:[#allocation9 + $0x18] sm:$0xff]
    %v128 = vld [vmem:[#allocation9 + $0x20] sm:$0xff]
    %v129 = vld [vmem:[#allocation9 + $0x28] sm:$0xff]
    %v130 = vld [vmem:[#allocation9 + $0x30] sm:$0xff]
    %v131 = vld [vmem:[#allocation9 + $0x38] sm:$0xff]
    %v132 = vld [vmem:[#allocation11] sm:$0xff]
    %v133 = vld [vmem:[#allocation11 + $0x8] sm:$0xff]
    %v134 = vld [vmem:[#allocation11 + $0x10] sm:$0xff]
    %v135 = vld [vmem:[#allocation11 + $0x18] sm:$0xff]
    %v136 = vld [vmem:[#allocation11 + $0x20] sm:$0xff]
    %v137 = vld [vmem:[#allocation11 + $0x28] sm:$0xff]
    %v138 = vld [vmem:[#allocation11 + $0x30] sm:$0xff]
    %v139 = vld [vmem:[#allocation11 + $0x38] sm:$0xff]
    %vm140 = vcmask 261120
    %v142 = vsel %vm140, %v116, 0
    %v145 = vsel %vm140, %v124, 0
    %147 = vmatpush.xpose.msra.mxu0 0.0
    %148 = vmatpush.xpose.msra.mxu0 0.0
    %149 = vmatpush.xpose.msra.mxu0 0.0
    %150 = vmatpush.xpose.msra.mxu0 0.0
    %151 = vmatpush.xpose.msra.mxu0 0.0
    %152 = vmatpush.xpose.msra.mxu0 0.0
    %153 = vmatpush.xpose.msra.mxu0 0.0
    %154 = vmatpush.xpose.msra.mxu0 0.0
    %155 = vmatpush.xpose.msra.mxu0 0.0
    %156 = vmatpush.xpose.msra.mxu0 0.0
    %157 = vmatpush.xpose.msra.mxu0 0.0
    %158 = vmatpush.xpose.msra.mxu0 0.0
    %159 = vmatpush.xpose.msra.mxu0 0.0
    %160 = vmatpush.xpose.msra.mxu0 0.0
    %161 = vmatpush.xpose.msra.mxu0 0.0
    %162 = vmatpush.xpose.msra.mxu0 %v145
    %163 = vmatmul.f32.gmra.mxu0 %v142
    %v164 = vpop.f32.mrf.mxu0
    %v165 = vadd.f32 0.0, %v164
    %166 = vdwg.mxu0
    %v168 = vsel %vm140, %v117, 0
    %v171 = vsel %vm140, %v125, 0
    %173 = vmatpush.xpose.msra.mxu0 0.0
    %174 = vmatpush.xpose.msra.mxu0 0.0
    %175 = vmatpush.xpose.msra.mxu0 0.0
    %176 = vmatpush.xpose.msra.mxu0 0.0
    %177 = vmatpush.xpose.msra.mxu0 0.0
    %178 = vmatpush.xpose.msra.mxu0 0.0
    %179 = vmatpush.xpose.msra.mxu0 0.0
    %180 = vmatpush.xpose.msra.mxu0 0.0
    %181 = vmatpush.xpose.msra.mxu0 0.0
    %182 = vmatpush.xpose.msra.mxu0 0.0
    %183 = vmatpush.xpose.msra.mxu0 0.0
    %184 = vmatpush.xpose.msra.mxu0 0.0
    %185 = vmatpush.xpose.msra.mxu0 0.0
    %186 = vmatpush.xpose.msra.mxu0 0.0
    %187 = vmatpush.xpose.msra.mxu0 0.0
    %188 = vmatpush.xpose.msra.mxu0 %v171
    %189 = vmatmul.f32.gmra.mxu0 %v168
    %v190 = vpop.f32.mrf.mxu0
    %v191 = vadd.f32 0.0, %v190
    %192 = vdwg.mxu0
    %v194 = vsel %vm140, %v118, 0
    %v197 = vsel %vm140, %v126, 0
    %199 = vmatpush.xpose.msra.mxu0 0.0
    %200 = vmatpush.xpose.msra.mxu0 0.0
    %201 = vmatpush.xpose.msra.mxu0 0.0
    %202 = vmatpush.xpose.msra.mxu0 0.0
    %203 = vmatpush.xpose.msra.mxu0 0.0
    %204 = vmatpush.xpose.msra.mxu0 0.0
    %205 = vmatpush.xpose.msra.mxu0 0.0
    %206 = vmatpush.xpose.msra.mxu0 0.0
    %207 = vmatpush.xpose.msra.mxu0 0.0
    %208 = vmatpush.xpose.msra.mxu0 0.0
    %209 = vmatpush.xpose.msra.mxu0 0.0
    %210 = vmatpush.xpose.msra.mxu0 0.0
    %211 = vmatpush.xpose.msra.mxu0 0.0
    %212 = vmatpush.xpose.msra.mxu0 0.0
    %213 = vmatpush.xpose.msra.mxu0 0.0
    %214 = vmatpush.xpose.msra.mxu0 %v197
    %215 = vmatmul.f32.gmra.mxu0 %v194
    %v216 = vpop.f32.mrf.mxu0
    %v217 = vadd.f32 0.0, %v216
    %218 = vdwg.mxu0
    %v220 = vsel %vm140, %v119, 0
    %v223 = vsel %vm140, %v127, 0
    %225 = vmatpush.xpose.msra.mxu0 0.0
    %226 = vmatpush.xpose.msra.mxu0 0.0
    %227 = vmatpush.xpose.msra.mxu0 0.0
    %228 = vmatpush.xpose.msra.mxu0 0.0
    %229 = vmatpush.xpose.msra.mxu0 0.0
    %230 = vmatpush.xpose.msra.mxu0 0.0
    %231 = vmatpush.xpose.msra.mxu0 0.0
    %232 = vmatpush.xpose.msra.mxu0 0.0
    %233 = vmatpush.xpose.msra.mxu0 0.0
    %234 = vmatpush.xpose.msra.mxu0 0.0
    %235 = vmatpush.xpose.msra.mxu0 0.0
    %236 = vmatpush.xpose.msra.mxu0 0.0
    %237 = vmatpush.xpose.msra.mxu0 0.0
    %238 = vmatpush.xpose.msra.mxu0 0.0
    %239 = vmatpush.xpose.msra.mxu0 0.0
    %240 = vmatpush.xpose.msra.mxu0 %v223
    %241 = vmatmul.f32.gmra.mxu0 %v220
    %v242 = vpop.f32.mrf.mxu0
    %v243 = vadd.f32 0.0, %v242
    %244 = vdwg.mxu0
    %v246 = vsel %vm140, %v120, 0
    %v249 = vsel %vm140, %v128, 0
    %251 = vmatpush.xpose.msra.mxu0 0.0
    %252 = vmatpush.xpose.msra.mxu0 0.0
    %253 = vmatpush.xpose.msra.mxu0 0.0
    %254 = vmatpush.xpose.msra.mxu0 0.0
    %255 = vmatpush.xpose.msra.mxu0 0.0
    %256 = vmatpush.xpose.msra.mxu0 0.0
    %257 = vmatpush.xpose.msra.mxu0 0.0
    %258 = vmatpush.xpose.msra.mxu0 0.0
    %259 = vmatpush.xpose.msra.mxu0 0.0
    %260 = vmatpush.xpose.msra.mxu0 0.0
    %261 = vmatpush.xpose.msra.mxu0 0.0
    %262 = vmatpush.xpose.msra.mxu0 0.0
    %263 = vmatpush.xpose.msra.mxu0 0.0
    %264 = vmatpush.xpose.msra.mxu0 0.0
    %265 = vmatpush.xpose.msra.mxu0 0.0
    %266 = vmatpush.xpose.msra.mxu0 %v249
    %267 = vmatmul.f32.gmra.mxu0 %v246
    %v268 = vpop.f32.mrf.mxu0
    %v269 = vadd.f32 0.0, %v268
    %270 = vdwg.mxu0
    %v272 = vsel %vm140, %v121, 0
    %v275 = vsel %vm140, %v129, 0
    %277 = vmatpush.xpose.msra.mxu0 0.0
    %278 = vmatpush.xpose.msra.mxu0 0.0
    %279 = vmatpush.xpose.msra.mxu0 0.0
    %280 = vmatpush.xpose.msra.mxu0 0.0
    %281 = vmatpush.xpose.msra.mxu0 0.0
    %282 = vmatpush.xpose.msra.mxu0 0.0
    %283 = vmatpush.xpose.msra.mxu0 0.0
    %284 = vmatpush.xpose.msra.mxu0 0.0
    %285 = vmatpush.xpose.msra.mxu0 0.0
    %286 = vmatpush.xpose.msra.mxu0 0.0
    %287 = vmatpush.xpose.msra.mxu0 0.0
    %288 = vmatpush.xpose.msra.mxu0 0.0
    %289 = vmatpush.xpose.msra.mxu0 0.0
    %290 = vmatpush.xpose.msra.mxu0 0.0
    %291 = vmatpush.xpose.msra.mxu0 0.0
    %292 = vmatpush.xpose.msra.mxu0 %v275
    %293 = vmatmul.f32.gmra.mxu0 %v272
    %v294 = vpop.f32.mrf.mxu0
    %v295 = vadd.f32 0.0, %v294
    %296 = vdwg.mxu0
    %v298 = vsel %vm140, %v122, 0
    %v301 = vsel %vm140, %v130, 0
    %303 = vmatpush.xpose.msra.mxu0 0.0
    %304 = vmatpush.xpose.msra.mxu0 0.0
    %305 = vmatpush.xpose.msra.mxu0 0.0
    %306 = vmatpush.xpose.msra.mxu0 0.0
    %307 = vmatpush.xpose.msra.mxu0 0.0
    %308 = vmatpush.xpose.msra.mxu0 0.0
    %309 = vmatpush.xpose.msra.mxu0 0.0
    %310 = vmatpush.xpose.msra.mxu0 0.0
    %311 = vmatpush.xpose.msra.mxu0 0.0
    %312 = vmatpush.xpose.msra.mxu0 0.0
    %313 = vmatpush.xpose.msra.mxu0 0.0
    %314 = vmatpush.xpose.msra.mxu0 0.0
    %315 = vmatpush.xpose.msra.mxu0 0.0
    %316 = vmatpush.xpose.msra.mxu0 0.0
    %317 = vmatpush.xpose.msra.mxu0 0.0
    %318 = vmatpush.xpose.msra.mxu0 %v301
    %319 = vmatmul.f32.gmra.mxu0 %v298
    %v320 = vpop.f32.mrf.mxu0
    %v321 = vadd.f32 0.0, %v320
    %322 = vdwg.mxu0
    %v324 = vsel %vm140, %v123, 0
    %v327 = vsel %vm140, %v131, 0
    %329 = vmatpush.xpose.msra.mxu0 0.0
    %330 = vmatpush.xpose.msra.mxu0 0.0
    %331 = vmatpush.xpose.msra.mxu0 0.0
    %332 = vmatpush.xpose.msra.mxu0 0.0
    %333 = vmatpush.xpose.msra.mxu0 0.0
    %334 = vmatpush.xpose.msra.mxu0 0.0
    %335 = vmatpush.xpose.msra.mxu0 0.0
    %336 = vmatpush.xpose.msra.mxu0 0.0
    %337 = vmatpush.xpose.msra.mxu0 0.0
    %338 = vmatpush.xpose.msra.mxu0 0.0
    %339 = vmatpush.xpose.msra.mxu0 0.0
    %340 = vmatpush.xpose.msra.mxu0 0.0
    %341 = vmatpush.xpose.msra.mxu0 0.0
    %342 = vmatpush.xpose.msra.mxu0 0.0
    %343 = vmatpush.xpose.msra.mxu0 0.0
    %344 = vmatpush.xpose.msra.mxu0 %v327
    %345 = vmatmul.f32.gmra.mxu0 %v324
    %v346 = vpop.f32.mrf.mxu0
    %v347 = vadd.f32 0.0, %v346
    %348 = vdwg.mxu0
    %v349 = vld [vmem:[#allocation2] sm:$0xff]
    %v350 = vld [vmem:[#allocation2 + $0x8] sm:$0xff]
    %v351 = vld [vmem:[#allocation2 + $0x10] sm:$0xff]
    %v352 = vld [vmem:[#allocation2 + $0x18] sm:$0xff]
    %v353 = vld [vmem:[#allocation2 + $0x20] sm:$0xff]
    %v354 = vld [vmem:[#allocation2 + $0x28] sm:$0xff]
    %v355 = vld [vmem:[#allocation2 + $0x30] sm:$0xff]
    %v356 = vld [vmem:[#allocation2 + $0x38] sm:$0xff]
    %vm357 = vcmask 64512
    %v358 = vsel %vm357, %v165, -inf
    %359 = vmax.xlane.f32.xlu0 %v358
    %v360 = vpop.xlane.xlu0 %359
    %v361 = vsel %vm357, %v191, -inf
    %362 = vmax.xlane.f32.xlu0 %v361
    %v363 = vpop.xlane.xlu0 %362
    %v364 = vsel %vm357, %v217, -inf
    %365 = vmax.xlane.f32.xlu0 %v364
    %v366 = vpop.xlane.xlu0 %365
    %v367 = vsel %vm357, %v243, -inf
    %368 = vmax.xlane.f32.xlu0 %v367
    %v369 = vpop.xlane.xlu0 %368
    %v370 = vsel %vm357, %v269, -inf
    %371 = vmax.xlane.f32.xlu0 %v370
    %v372 = vpop.xlane.xlu0 %371
    %v373 = vsel %vm357, %v295, -inf
    %374 = vmax.xlane.f32.xlu0 %v373
    %v375 = vpop.xlane.xlu0 %374
    %v376 = vsel %vm357, %v321, -inf
    %377 = vmax.xlane.f32.xlu0 %v376
    %v378 = vpop.xlane.xlu0 %377
    %v379 = vsel %vm357, %v347, -inf
    %380 = vmax.xlane.f32.xlu0 %v379
    %v381 = vpop.xlane.xlu0 %380
    %v382 = vmax.f32 %v349, %v360
    %v383 = vmax.f32 %v350, %v363
    %v384 = vmax.f32 %v351, %v366
    %v385 = vmax.f32 %v352, %v369
    %v386 = vmax.f32 %v353, %v372
    %v387 = vmax.f32 %v354, %v375
    %v388 = vmax.f32 %v355, %v378
    %v389 = vmax.f32 %v356, %v381
    %v390 = vsub.f32 %v349, %v382
    %v391 = vsub.f32 %v350, %v383
    %v392 = vsub.f32 %v351, %v384
    %v393 = vsub.f32 %v352, %v385
    %v394 = vsub.f32 %v353, %v386
    %v395 = vsub.f32 %v354, %v387
    %v396 = vsub.f32 %v355, %v388
    %v397 = vsub.f32 %v356, %v389
    %v398 = vmul.f32 %v390, 1.442695
    %v399 = vpow.pop %v398
    %v400 = vmul.f32 %v391, 1.442695
    %v401 = vpow.pop %v400
    %v402 = vmul.f32 %v392, 1.442695
    %v403 = vpow.pop %v402
    %v404 = vmul.f32 %v393, 1.442695
    %v405 = vpow.pop %v404
    %v406 = vmul.f32 %v394, 1.442695
    %v407 = vpow.pop %v406
    %v408 = vmul.f32 %v395, 1.442695
    %v409 = vpow.pop %v408
    %v410 = vmul.f32 %v396, 1.442695
    %v411 = vpow.pop %v410
    %v412 = vmul.f32 %v397, 1.442695
    %v413 = vpow.pop %v412
    %415 = vset.pattern.permute.xlu0 0
    %416 = vperm.xlu0 %415, %v382
    %v417 = vpop.permute.xlu0 %416
    %420 = vset.pattern.permute.xlu0 0
    %421 = vperm.xlu0 %420, %v383
    %v422 = vpop.permute.xlu0 %421
    %425 = vset.pattern.permute.xlu0 0
    %426 = vperm.xlu0 %425, %v384
    %v427 = vpop.permute.xlu0 %426
    %430 = vset.pattern.permute.xlu0 0
    %431 = vperm.xlu0 %430, %v385
    %v432 = vpop.permute.xlu0 %431
    %435 = vset.pattern.permute.xlu0 0
    %436 = vperm.xlu0 %435, %v386
    %v437 = vpop.permute.xlu0 %436
    %440 = vset.pattern.permute.xlu0 0
    %441 = vperm.xlu0 %440, %v387
    %v442 = vpop.permute.xlu0 %441
    %445 = vset.pattern.permute.xlu0 0
    %446 = vperm.xlu0 %445, %v388
    %v447 = vpop.permute.xlu0 %446
    %450 = vset.pattern.permute.xlu0 0
    %451 = vperm.xlu0 %450, %v389
    %v452 = vpop.permute.xlu0 %451
    %v454 = vsub.f32 %v165, %v417
    %v455 = vsub.f32 %v191, %v422
    %v456 = vsub.f32 %v217, %v427
    %v457 = vsub.f32 %v243, %v432
    %v458 = vsub.f32 %v269, %v437
    %v459 = vsub.f32 %v295, %v442
    %v460 = vsub.f32 %v321, %v447
    %v461 = vsub.f32 %v347, %v452
    %v462 = vmul.f32 %v454, 1.442695
    %v463 = vpow.pop %v462
    %v464 = vmul.f32 %v455, 1.442695
    %v465 = vpow.pop %v464
    %v466 = vmul.f32 %v456, 1.442695
    %v467 = vpow.pop %v466
    %v468 = vmul.f32 %v457, 1.442695
    %v469 = vpow.pop %v468
    %v470 = vmul.f32 %v458, 1.442695
    %v471 = vpow.pop %v470
    %v472 = vmul.f32 %v459, 1.442695
    %v473 = vpow.pop %v472
    %v474 = vmul.f32 %v460, 1.442695
    %v475 = vpow.pop %v474
    %v476 = vmul.f32 %v461, 1.442695
    %v477 = vpow.pop %v476
    %v478 = vld [vmem:[#allocation3] sm:$0xff]
    %v479 = vld [vmem:[#allocation3 + $0x8] sm:$0xff]
    %v480 = vld [vmem:[#allocation3 + $0x10] sm:$0xff]
    %v481 = vld [vmem:[#allocation3 + $0x18] sm:$0xff]
    %v482 = vld [vmem:[#allocation3 + $0x20] sm:$0xff]
    %v483 = vld [vmem:[#allocation3 + $0x28] sm:$0xff]
    %v484 = vld [vmem:[#allocation3 + $0x30] sm:$0xff]
    %v485 = vld [vmem:[#allocation3 + $0x38] sm:$0xff]
    %v486 = vmul.f32 %v399, %v478
    %v487 = vmul.f32 %v401, %v479
    %v488 = vmul.f32 %v403, %v480
    %v489 = vmul.f32 %v405, %v481
    %v490 = vmul.f32 %v407, %v482
    %v491 = vmul.f32 %v409, %v483
    %v492 = vmul.f32 %v411, %v484
    %v493 = vmul.f32 %v413, %v485
    %v494 = vsel %vm357, %v463, 0.0
    %495 = vadd.xlane.f32.xlu0 %v494
    %v496 = vpop.xlane.xlu0 %495
    %v497 = vsel %vm357, %v465, 0.0
    %498 = vadd.xlane.f32.xlu0 %v497
    %v499 = vpop.xlane.xlu0 %498
    %v500 = vsel %vm357, %v467, 0.0
    %501 = vadd.xlane.f32.xlu0 %v500
    %v502 = vpop.xlane.xlu0 %501
    %v503 = vsel %vm357, %v469, 0.0
    %504 = vadd.xlane.f32.xlu0 %v503
    %v505 = vpop.xlane.xlu0 %504
    %v506 = vsel %vm357, %v471, 0.0
    %507 = vadd.xlane.f32.xlu0 %v506
    %v508 = vpop.xlane.xlu0 %507
    %v509 = vsel %vm357, %v473, 0.0
    %510 = vadd.xlane.f32.xlu0 %v509
    %v511 = vpop.xlane.xlu0 %510
    %v512 = vsel %vm357, %v475, 0.0
    %513 = vadd.xlane.f32.xlu0 %v512
    %v514 = vpop.xlane.xlu0 %513
    %v515 = vsel %vm357, %v477, 0.0
    %516 = vadd.xlane.f32.xlu0 %v515
    %v517 = vpop.xlane.xlu0 %516
    %v518 = vadd.f32 %v486, %v496
    %v519 = vadd.f32 %v487, %v499
    %v520 = vadd.f32 %v488, %v502
    %v521 = vadd.f32 %v489, %v505
    %v522 = vadd.f32 %v490, %v508
    %v523 = vadd.f32 %v491, %v511
    %v524 = vadd.f32 %v492, %v514
    %v525 = vadd.f32 %v493, %v517
    %vm526 = vcmask 7168
    %527 = vst.msk [vmem:[#allocation3] sm:$0xff] %vm526, %v518
    %528 = vst.msk [vmem:[#allocation3 + $0x8] sm:$0xff] %vm526, %v519
    %529 = vst.msk [vmem:[#allocation3 + $0x10] sm:$0xff] %vm526, %v520
    %530 = vst.msk [vmem:[#allocation3 + $0x18] sm:$0xff] %vm526, %v521
    %531 = vst.msk [vmem:[#allocation3 + $0x20] sm:$0xff] %vm526, %v522
    %532 = vst.msk [vmem:[#allocation3 + $0x28] sm:$0xff] %vm526, %v523
    %533 = vst.msk [vmem:[#allocation3 + $0x30] sm:$0xff] %vm526, %v524
    %534 = vst.msk [vmem:[#allocation3 + $0x38] sm:$0xff] %vm526, %v525
    %v536 = vsel %vm357, %v463, 0
    %538 = vmatpush.msra.mxu0 0.0
    %539 = vmatpush.msra.mxu0 0.0
    %540 = vmatpush.msra.mxu0 0.0
    %541 = vmatpush.msra.mxu0 0.0
    %542 = vmatpush.msra.mxu0 0.0
    %543 = vmatpush.msra.mxu0 0.0
    %544 = vmatpush.msra.mxu0 0.0
    %545 = vmatpush.msra.mxu0 0.0
    %546 = vmatpush.msra.mxu0 0.0
    %547 = vmatpush.msra.mxu0 0.0
    %548 = vmatpush.msra.mxu0 0.0
    %549 = vmatpush.msra.mxu0 0.0
    %550 = vmatpush.msra.mxu0 0.0
    %551 = vmatpush.msra.mxu0 0.0
    %552 = vmatpush.msra.mxu0 0.0
    %553 = vmatpush.msra.mxu0 %v132
    %554 = vmatmul.f32.gmra.mxu0 %v536
    %v555 = vpop.f32.mrf.mxu0
    %v556 = vadd.f32 0.0, %v555
    %557 = vdwg.mxu0
    %v559 = vsel %vm357, %v465, 0
    %561 = vmatpush.msra.mxu0 0.0
    %562 = vmatpush.msra.mxu0 0.0
    %563 = vmatpush.msra.mxu0 0.0
    %564 = vmatpush.msra.mxu0 0.0
    %565 = vmatpush.msra.mxu0 0.0
    %566 = vmatpush.msra.mxu0 0.0
    %567 = vmatpush.msra.mxu0 0.0
    %568 = vmatpush.msra.mxu0 0.0
    %569 = vmatpush.msra.mxu0 0.0
    %570 = vmatpush.msra.mxu0 0.0
    %571 = vmatpush.msra.mxu0 0.0
    %572 = vmatpush.msra.mxu0 0.0
    %573 = vmatpush.msra.mxu0 0.0
    %574 = vmatpush.msra.mxu0 0.0
    %575 = vmatpush.msra.mxu0 0.0
    %576 = vmatpush.msra.mxu0 %v133
    %577 = vmatmul.f32.gmra.mxu0 %v559
    %v578 = vpop.f32.mrf.mxu0
    %v579 = vadd.f32 0.0, %v578
    %580 = vdwg.mxu0
    %v582 = vsel %vm357, %v467, 0
    %584 = vmatpush.msra.mxu0 0.0
    %585 = vmatpush.msra.mxu0 0.0
    %586 = vmatpush.msra.mxu0 0.0
    %587 = vmatpush.msra.mxu0 0.0
    %588 = vmatpush.msra.mxu0 0.0
    %589 = vmatpush.msra.mxu0 0.0
    %590 = vmatpush.msra.mxu0 0.0
    %591 = vmatpush.msra.mxu0 0.0
    %592 = vmatpush.msra.mxu0 0.0
    %593 = vmatpush.msra.mxu0 0.0
    %594 = vmatpush.msra.mxu0 0.0
    %595 = vmatpush.msra.mxu0 0.0
    %596 = vmatpush.msra.mxu0 0.0
    %597 = vmatpush.msra.mxu0 0.0
    %598 = vmatpush.msra.mxu0 0.0
    %599 = vmatpush.msra.mxu0 %v134
    %600 = vmatmul.f32.gmra.mxu0 %v582
    %v601 = vpop.f32.mrf.mxu0
    %v602 = vadd.f32 0.0, %v601
    %603 = vdwg.mxu0
    %v605 = vsel %vm357, %v469, 0
    %607 = vmatpush.msra.mxu0 0.0
    %608 = vmatpush.msra.mxu0 0.0
    %609 = vmatpush.msra.mxu0 0.0
    %610 = vmatpush.msra.mxu0 0.0
    %611 = vmatpush.msra.mxu0 0.0
    %612 = vmatpush.msra.mxu0 0.0
    %613 = vmatpush.msra.mxu0 0.0
    %614 = vmatpush.msra.mxu0 0.0
    %615 = vmatpush.msra.mxu0 0.0
    %616 = vmatpush.msra.mxu0 0.0
    %617 = vmatpush.msra.mxu0 0.0
    %618 = vmatpush.msra.mxu0 0.0
    %619 = vmatpush.msra.mxu0 0.0
    %620 = vmatpush.msra.mxu0 0.0
    %621 = vmatpush.msra.mxu0 0.0
    %622 = vmatpush.msra.mxu0 %v135
    %623 = vmatmul.f32.gmra.mxu0 %v605
    %v624 = vpop.f32.mrf.mxu0
    %v625 = vadd.f32 0.0, %v624
    %626 = vdwg.mxu0
    %v628 = vsel %vm357, %v471, 0
    %630 = vmatpush.msra.mxu0 0.0
    %631 = vmatpush.msra.mxu0 0.0
    %632 = vmatpush.msra.mxu0 0.0
    %633 = vmatpush.msra.mxu0 0.0
    %634 = vmatpush.msra.mxu0 0.0
    %635 = vmatpush.msra.mxu0 0.0
    %636 = vmatpush.msra.mxu0 0.0
    %637 = vmatpush.msra.mxu0 0.0
    %638 = vmatpush.msra.mxu0 0.0
    %639 = vmatpush.msra.mxu0 0.0
    %640 = vmatpush.msra.mxu0 0.0
    %641 = vmatpush.msra.mxu0 0.0
    %642 = vmatpush.msra.mxu0 0.0
    %643 = vmatpush.msra.mxu0 0.0
    %644 = vmatpush.msra.mxu0 0.0
    %645 = vmatpush.msra.mxu0 %v136
    %646 = vmatmul.f32.gmra.mxu0 %v628
    %v647 = vpop.f32.mrf.mxu0
    %v648 = vadd.f32 0.0, %v647
    %649 = vdwg.mxu0
    %v651 = vsel %vm357, %v473, 0
    %653 = vmatpush.msra.mxu0 0.0
    %654 = vmatpush.msra.mxu0 0.0
    %655 = vmatpush.msra.mxu0 0.0
    %656 = vmatpush.msra.mxu0 0.0
    %657 = vmatpush.msra.mxu0 0.0
    %658 = vmatpush.msra.mxu0 0.0
    %659 = vmatpush.msra.mxu0 0.0
    %660 = vmatpush.msra.mxu0 0.0
    %661 = vmatpush.msra.mxu0 0.0
    %662 = vmatpush.msra.mxu0 0.0
    %663 = vmatpush.msra.mxu0 0.0
    %664 = vmatpush.msra.mxu0 0.0
    %665 = vmatpush.msra.mxu0 0.0
    %666 = vmatpush.msra.mxu0 0.0
    %667 = vmatpush.msra.mxu0 0.0
    %668 = vmatpush.msra.mxu0 %v137
    %669 = vmatmul.f32.gmra.mxu0 %v651
    %v670 = vpop.f32.mrf.mxu0
    %v671 = vadd.f32 0.0, %v670
    %672 = vdwg.mxu0
    %v674 = vsel %vm357, %v475, 0
    %676 = vmatpush.msra.mxu0 0.0
    %677 = vmatpush.msra.mxu0 0.0
    %678 = vmatpush.msra.mxu0 0.0
    %679 = vmatpush.msra.mxu0 0.0
    %680 = vmatpush.msra.mxu0 0.0
    %681 = vmatpush.msra.mxu0 0.0
    %682 = vmatpush.msra.mxu0 0.0
    %683 = vmatpush.msra.mxu0 0.0
    %684 = vmatpush.msra.mxu0 0.0
    %685 = vmatpush.msra.mxu0 0.0
    %686 = vmatpush.msra.mxu0 0.0
    %687 = vmatpush.msra.mxu0 0.0
    %688 = vmatpush.msra.mxu0 0.0
    %689 = vmatpush.msra.mxu0 0.0
    %690 = vmatpush.msra.mxu0 0.0
    %691 = vmatpush.msra.mxu0 %v138
    %692 = vmatmul.f32.gmra.mxu0 %v674
    %v693 = vpop.f32.mrf.mxu0
    %v694 = vadd.f32 0.0, %v693
    %695 = vdwg.mxu0
    %v697 = vsel %vm357, %v477, 0
    %699 = vmatpush.msra.mxu0 0.0
    %700 = vmatpush.msra.mxu0 0.0
    %701 = vmatpush.msra.mxu0 0.0
    %702 = vmatpush.msra.mxu0 0.0
    %703 = vmatpush.msra.mxu0 0.0
    %704 = vmatpush.msra.mxu0 0.0
    %705 = vmatpush.msra.mxu0 0.0
    %706 = vmatpush.msra.mxu0 0.0
    %707 = vmatpush.msra.mxu0 0.0
    %708 = vmatpush.msra.mxu0 0.0
    %709 = vmatpush.msra.mxu0 0.0
    %710 = vmatpush.msra.mxu0 0.0
    %711 = vmatpush.msra.mxu0 0.0
    %712 = vmatpush.msra.mxu0 0.0
    %713 = vmatpush.msra.mxu0 0.0
    %714 = vmatpush.msra.mxu0 %v139
    %715 = vmatmul.f32.gmra.mxu0 %v697
    %v716 = vpop.f32.mrf.mxu0
    %v717 = vadd.f32 0.0, %v716
    %718 = vdwg.mxu0
    %v719 = vld [vmem:[#allocation4] sm:$0xff]
    %v720 = vld [vmem:[#allocation4 + $0x8] sm:$0xff]
    %v721 = vld [vmem:[#allocation4 + $0x10] sm:$0xff]
    %v722 = vld [vmem:[#allocation4 + $0x18] sm:$0xff]
    %v723 = vld [vmem:[#allocation4 + $0x20] sm:$0xff]
    %v724 = vld [vmem:[#allocation4 + $0x28] sm:$0xff]
    %v725 = vld [vmem:[#allocation4 + $0x30] sm:$0xff]
    %v726 = vld [vmem:[#allocation4 + $0x38] sm:$0xff]
    %728 = vset.pattern.permute.xlu0 0
    %729 = vperm.xlu0 %728, %v399
    %v730 = vpop.permute.xlu0 %729
    %733 = vset.pattern.permute.xlu0 0
    %734 = vperm.xlu0 %733, %v401
    %v735 = vpop.permute.xlu0 %734
    %738 = vset.pattern.permute.xlu0 0
    %739 = vperm.xlu0 %738, %v403
    %v740 = vpop.permute.xlu0 %739
    %743 = vset.pattern.permute.xlu0 0
    %744 = vperm.xlu0 %743, %v405
    %v745 = vpop.permute.xlu0 %744
    %748 = vset.pattern.permute.xlu0 0
    %749 = vperm.xlu0 %748, %v407
    %v750 = vpop.permute.xlu0 %749
    %753 = vset.pattern.permute.xlu0 0
    %754 = vperm.xlu0 %753, %v409
    %v755 = vpop.permute.xlu0 %754
    %758 = vset.pattern.permute.xlu0 0
    %759 = vperm.xlu0 %758, %v411
    %v760 = vpop.permute.xlu0 %759
    %763 = vset.pattern.permute.xlu0 0
    %764 = vperm.xlu0 %763, %v413
    %v765 = vpop.permute.xlu0 %764
    %v767 = vmul.f32 %v730, %v719
    %v768 = vmul.f32 %v735, %v720
    %v769 = vmul.f32 %v740, %v721
    %v770 = vmul.f32 %v745, %v722
    %v771 = vmul.f32 %v750, %v723
    %v772 = vmul.f32 %v755, %v724
    %v773 = vmul.f32 %v760, %v725
    %v774 = vmul.f32 %v765, %v726
    %v775 = vadd.f32 %v767, %v556
    %v776 = vadd.f32 %v768, %v579
    %v777 = vadd.f32 %v769, %v602
    %v778 = vadd.f32 %v770, %v625
    %v779 = vadd.f32 %v771, %v648
    %v780 = vadd.f32 %v772, %v671
    %v781 = vadd.f32 %v773, %v694
    %v782 = vadd.f32 %v774, %v717
    %783 = vst.msk [vmem:[#allocation4] sm:$0xff] %vm140, %v775
    %784 = vst.msk [vmem:[#allocation4 + $0x8] sm:$0xff] %vm140, %v776
    %785 = vst.msk [vmem:[#allocation4 + $0x10] sm:$0xff] %vm140, %v777
    %786 = vst.msk [vmem:[#allocation4 + $0x18] sm:$0xff] %vm140, %v778
    %787 = vst.msk [vmem:[#allocation4 + $0x20] sm:$0xff] %vm140, %v779
    %788 = vst.msk [vmem:[#allocation4 + $0x28] sm:$0xff] %vm140, %v780
    %789 = vst.msk [vmem:[#allocation4 + $0x30] sm:$0xff] %vm140, %v781
    %790 = vst.msk [vmem:[#allocation4 + $0x38] sm:$0xff] %vm140, %v782
    %791 = vst.msk [vmem:[#allocation2] sm:$0xff] %vm526, %v382
    %792 = vst.msk [vmem:[#allocation2 + $0x8] sm:$0xff] %vm526, %v383
    %793 = vst.msk [vmem:[#allocation2 + $0x10] sm:$0xff] %vm526, %v384
    %794 = vst.msk [vmem:[#allocation2 + $0x18] sm:$0xff] %vm526, %v385
    %795 = vst.msk [vmem:[#allocation2 + $0x20] sm:$0xff] %vm526, %v386
    %796 = vst.msk [vmem:[#allocation2 + $0x28] sm:$0xff] %vm526, %v387
    %797 = vst.msk [vmem:[#allocation2 + $0x30] sm:$0xff] %vm526, %v388
    %798 = vst.msk [vmem:[#allocation2 + $0x38] sm:$0xff] %vm526, %v389
    // Predicated region
    $region30: #{tpu_custom_call.1} parent=1 // pred_check
      %p799 = pneg %p62
    $region31: #{tpu_custom_call.1} parent=1 // pred_check_branch
      %801 = sbr.rel (%p799) target = $region33
    $region32: #{tpu_custom_call.1} parent=1 // pred_region
      %v802 = vld [vmem:[#allocation3] sm:$0xff]
      %v803 = vld [vmem:[#allocation3 + $0x8] sm:$0xff]
      %v804 = vld [vmem:[#allocation3 + $0x10] sm:$0xff]
      %v805 = vld [vmem:[#allocation3 + $0x18] sm:$0xff]
      %v806 = vld [vmem:[#allocation3 + $0x20] sm:$0xff]
      %v807 = vld [vmem:[#allocation3 + $0x28] sm:$0xff]
      %v808 = vld [vmem:[#allocation3 + $0x30] sm:$0xff]
      %v809 = vld [vmem:[#allocation3 + $0x38] sm:$0xff]
      %v810 = vrcp.pop %v802
      %v811 = vmul.f32 %v802, %v810
      %v812 = vsub.f32 1.0, %v811
      %v813 = vmul.f32 %v810, %v812
      %v814 = vadd.f32 %v810, %v813
      %vm815 = vweird.f32 %v802
      %vm816 = vweird.f32 %v810
      %vm817 = vmor %vm815, %vm816
      %v818 = vsel %vm817, %v810, %v814
      %v819 = vand.u32 2147483647, %v802
      %vm820 = vcmp.eq.f32.partialorder %v819, 8.507059e+37
      %v821 = vand.u32 %v802, 2147483648
      %v822 = vor.u32 1.1754944e-38, %v821
      %v823 = vsel %vm820, %v822, %v818
      %v824 = vmul.f32 1.0, %v823
      %v825 = vrcp.pop %v803
      %v826 = vmul.f32 %v803, %v825
      %v827 = vsub.f32 1.0, %v826
      %v828 = vmul.f32 %v825, %v827
      %v829 = vadd.f32 %v825, %v828
      %vm830 = vweird.f32 %v803
      %vm831 = vweird.f32 %v825
      %vm832 = vmor %vm830, %vm831
      %v833 = vsel %vm832, %v825, %v829
      %v834 = vand.u32 2147483647, %v803
      %vm835 = vcmp.eq.f32.partialorder %v834, 8.507059e+37
      %v836 = vand.u32 %v803, 2147483648
      %v837 = vor.u32 1.1754944e-38, %v836
      %v838 = vsel %vm835, %v837, %v833
      %v839 = vmul.f32 1.0, %v838
      %v840 = vrcp.pop %v804
      %v841 = vmul.f32 %v804, %v840
      %v842 = vsub.f32 1.0, %v841
      %v843 = vmul.f32 %v840, %v842
      %v844 = vadd.f32 %v840, %v843
      %vm845 = vweird.f32 %v804
      %vm846 = vweird.f32 %v840
      %vm847 = vmor %vm845, %vm846
      %v848 = vsel %vm847, %v840, %v844
      %v849 = vand.u32 2147483647, %v804
      %vm850 = vcmp.eq.f32.partialorder %v849, 8.507059e+37
      %v851 = vand.u32 %v804, 2147483648
      %v852 = vor.u32 1.1754944e-38, %v851
      %v853 = vsel %vm850, %v852, %v848
      %v854 = vmul.f32 1.0, %v853
      %v855 = vrcp.pop %v805
      %v856 = vmul.f32 %v805, %v855
      %v857 = vsub.f32 1.0, %v856
      %v858 = vmul.f32 %v855, %v857
      %v859 = vadd.f32 %v855, %v858
      %vm860 = vweird.f32 %v805
      %vm861 = vweird.f32 %v855
      %vm862 = vmor %vm860, %vm861
      %v863 = vsel %vm862, %v855, %v859
      %v864 = vand.u32 2147483647, %v805
      %vm865 = vcmp.eq.f32.partialorder %v864, 8.507059e+37
      %v866 = vand.u32 %v805, 2147483648
      %v867 = vor.u32 1.1754944e-38, %v866
      %v868 = vsel %vm865, %v867, %v863
      %v869 = vmul.f32 1.0, %v868
      %v870 = vrcp.pop %v806
      %v871 = vmul.f32 %v806, %v870
      %v872 = vsub.f32 1.0, %v871
      %v873 = vmul.f32 %v870, %v872
      %v874 = vadd.f32 %v870, %v873
      %vm875 = vweird.f32 %v806
      %vm876 = vweird.f32 %v870
      %vm877 = vmor %vm875, %vm876
      %v878 = vsel %vm877, %v870, %v874
      %v879 = vand.u32 2147483647, %v806
      %vm880 = vcmp.eq.f32.partialorder %v879, 8.507059e+37
      %v881 = vand.u32 %v806, 2147483648
      %v882 = vor.u32 1.1754944e-38, %v881
      %v883 = vsel %vm880, %v882, %v878
      %v884 = vmul.f32 1.0, %v883
      %v885 = vrcp.pop %v807
      %v886 = vmul.f32 %v807, %v885
      %v887 = vsub.f32 1.0, %v886
      %v888 = vmul.f32 %v885, %v887
      %v889 = vadd.f32 %v885, %v888
      %vm890 = vweird.f32 %v807
      %vm891 = vweird.f32 %v885
      %vm892 = vmor %vm890, %vm891
      %v893 = vsel %vm892, %v885, %v889
      %v894 = vand.u32 2147483647, %v807
      %vm895 = vcmp.eq.f32.partialorder %v894, 8.507059e+37
      %v896 = vand.u32 %v807, 2147483648
      %v897 = vor.u32 1.1754944e-38, %v896
      %v898 = vsel %vm895, %v897, %v893
      %v899 = vmul.f32 1.0, %v898
      %v900 = vrcp.pop %v808
      %v901 = vmul.f32 %v808, %v900
      %v902 = vsub.f32 1.0, %v901
      %v903 = vmul.f32 %v900, %v902
      %v904 = vadd.f32 %v900, %v903
      %vm905 = vweird.f32 %v808
      %vm906 = vweird.f32 %v900
      %vm907 = vmor %vm905, %vm906
      %v908 = vsel %vm907, %v900, %v904
      %v909 = vand.u32 2147483647, %v808
      %vm910 = vcmp.eq.f32.partialorder %v909, 8.507059e+37
      %v911 = vand.u32 %v808, 2147483648
      %v912 = vor.u32 1.1754944e-38, %v911
      %v913 = vsel %vm910, %v912, %v908
      %v914 = vmul.f32 1.0, %v913
      %v915 = vrcp.pop %v809
      %v916 = vmul.f32 %v809, %v915
      %v917 = vsub.f32 1.0, %v916
      %v918 = vmul.f32 %v915, %v917
      %v919 = vadd.f32 %v915, %v918
      %vm920 = vweird.f32 %v809
      %vm921 = vweird.f32 %v915
      %vm922 = vmor %vm920, %vm921
      %v923 = vsel %vm922, %v915, %v919
      %v924 = vand.u32 2147483647, %v809
      %vm925 = vcmp.eq.f32.partialorder %v924, 8.507059e+37
      %v926 = vand.u32 %v809, 2147483648
      %v927 = vor.u32 1.1754944e-38, %v926
      %v928 = vsel %vm925, %v927, %v923
      %v929 = vmul.f32 1.0, %v928
      %v930 = vld [vmem:[#allocation4] sm:$0xff]
      %932 = vset.pattern.permute.xlu0 0
      %933 = vperm.xlu0 %932, %v824
      %v934 = vpop.permute.xlu0 %933
      %v936 = vmul.f32 %v930, %v934
      %937 = vst.msk [vmem:[#allocation12] sm:$0xff] %vm140, %v936
      %s938 = scalar_lea.vmem [#allocation4], 8
      %v939 = vld [vmem:[%s938] sm:$0xff]
      %941 = vset.pattern.permute.xlu0 0
      %942 = vperm.xlu0 %941, %v839
      %v943 = vpop.permute.xlu0 %942
      %v945 = vmul.f32 %v939, %v943
      %947 = vrot.lane.b32.xlu0 %v945, 32
      %v948 = vpop.permute.xlu0 %947
      %vm950 = vcmask 523520
      %951 = vst.msk [vmem:[#allocation12] sm:$0xff] %vm950, %v948
      %s952 = scalar_lea.vmem [#allocation4], 16
      %v953 = vld [vmem:[%s952] sm:$0xff]
      %955 = vset.pattern.permute.xlu0 0
      %956 = vperm.xlu0 %955, %v854
      %v957 = vpop.permute.xlu0 %956
      %v959 = vmul.f32 %v953, %v957
      %961 = vrot.lane.b32.xlu0 %v959, 64
      %v962 = vpop.permute.xlu0 %961
      %vm964 = vcmask 785920
      %965 = vst.msk [vmem:[#allocation12] sm:$0xff] %vm964, %v962
      %s966 = scalar_lea.vmem [#allocation4], 24
      %v967 = vld [vmem:[%s966] sm:$0xff]
      %969 = vset.pattern.permute.xlu0 0
      %970 = vperm.xlu0 %969, %v869
      %v971 = vpop.permute.xlu0 %970
      %v973 = vmul.f32 %v967, %v971
      %975 = vrot.lane.b32.xlu0 %v973, 96
      %v976 = vpop.permute.xlu0 %975
      %vm978 = vcmask 1048320
      %979 = vst.msk [vmem:[#allocation12] sm:$0xff] %vm978, %v976
      %s980 = scalar_lea.vmem [#allocation4], 32
      %v981 = vld [vmem:[%s980] sm:$0xff]
      %983 = vset.pattern.permute.xlu0 0
      %984 = vperm.xlu0 %983, %v884
      %v985 = vpop.permute.xlu0 %984
      %v987 = vmul.f32 %v981, %v985
      %988 = vst.msk [vmem:[#allocation12 + $0x8] sm:$0xff] %vm140, %v987
      %s989 = scalar_lea.vmem [#allocation4], 40
      %v990 = vld [vmem:[%s989] sm:$0xff]
      %992 = vset.pattern.permute.xlu0 0
      %993 = vperm.xlu0 %992, %v899
      %v994 = vpop.permute.xlu0 %993
      %v996 = vmul.f32 %v990, %v994
      %998 = vrot.lane.b32.xlu0 %v996, 32
      %v999 = vpop.permute.xlu0 %998
      %1001 = vst.msk [vmem:[#allocation12 + $0x8] sm:$0xff] %vm950, %v999
      %s1002 = scalar_lea.vmem [#allocation4], 48
      %v1003 = vld [vmem:[%s1002] sm:$0xff]
      %1005 = vset.pattern.permute.xlu0 0
      %1006 = vperm.xlu0 %1005, %v914
      %v1007 = vpop.permute.xlu0 %1006
      %v1009 = vmul.f32 %v1003, %v1007
      %1011 = vrot.lane.b32.xlu0 %v1009, 64
      %v1012 = vpop.permute.xlu0 %1011
      %1014 = vst.msk [vmem:[#allocation12 + $0x8] sm:$0xff] %vm964, %v1012
      %s1015 = scalar_lea.vmem [#allocation4], 56
      %v1016 = vld [vmem:[%s1015] sm:$0xff]
      %1018 = vset.pattern.permute.xlu0 0
      %1019 = vperm.xlu0 %1018, %v929
      %v1020 = vpop.permute.xlu0 %1019
      %v1022 = vmul.f32 %v1016, %v1020
      %1024 = vrot.lane.b32.xlu0 %v1022, 96
      %v1025 = vpop.permute.xlu0 %1024
      %1027 = vst.msk [vmem:[#allocation12 + $0x8] sm:$0xff] %vm978, %v1025
    $region33: #{tpu_custom_call.1} parent=1 // pred_fallthru
      _
    // Predicated region
    $region34: #{tpu_custom_call.1} parent=1 // pred_check
      _
    $region35: #{tpu_custom_call.1} parent=1 // pred_check_branch
      %1029 = sbr.rel (0) target = $region37
    $region36: #{tpu_custom_call.1} parent=1 // pred_region
      %1031 = vsyncadd [#allocation8], 0
      %s1033 = sshll.u32 [#allocation12], 4
      %s1034 = int_to_ptr.vmem [resolvable:$true] %s1033
      %s1035 = sshll.u32 %s3, 4
      %s1036 = int_to_ptr.hbm [resolvable:$true] %s1035
      %1038 = dma.vmem_to_hbm [thread:$0]  %s1034, 256, %s1036, [#allocation8]
    $region37: #{tpu_custom_call.1} parent=1 // pred_fallthru
      _
    // Predicated region
    $region38: #{tpu_custom_call.1} parent=1 // pred_check
      _
    $region39: #{tpu_custom_call.1} parent=1 // pred_check_branch
      %1040 = sbr.rel (0) target = $region41
    $region40: #{tpu_custom_call.1} parent=1 // pred_region
      %1042 = dma.done [#allocation8], 256
    $region41: #{tpu_custom_call.1} parent=1 // pred_fallthru
      _
    %1043 = vsyncpa [#allocation7], 1
    %1044 = vsyncpa [#allocation10], 1
    %1045 = vsyncpa [#allocation8], 1

</llo_original>
